<compile_context>
chip_gen: v5e
topology: v5e:2x2
jax: 0.10.0
libtpu: 0.0.40
codegen_flags: <defaults>
</compile_context>

<pallas_src>
import jax
import jax.numpy as jnp
from jax.experimental import pallas as pl
from jax.experimental.pallas import tpu as pltpu

# Conv hyper-parameters of nn.Conv2d(2, 4, kernel_size=3, stride=2, padding=1)
CIN, COUT = 2, 4
KH, KW = 3, 3
SH, SW = 2, 2
PH, PW = 1, 1

COUT_PAD = 8                 # pad out-channels 4 -> 8 (sublane friendly)
K = KH * KW * CIN            # 18 real contraction rows
K_BIAS = K                   # row 18 holds the constant-1 "bias input"
K_PAD = 24                   # contraction dim padded to a multiple of 8
PHASES = SH * SW             # 4 stride-2 space-to-depth phases
LANE = 128


def _round_up(x, m):
    return (x + m - 1) // m * m


@jax.jit
def conv2d_pallas(x_nchw, weight_oihw, bias):
    N, C, H, W = x_nchw.shape
    assert C == CIN
    HO = (H + 2 * PH - KH) // SH + 1
    WO = (W + 2 * PW - KW) // SW + 1
    flat = (HO + 1) * (WO + 1)           # phase-plane length (incl. halo col/row)
    LM = _round_up(flat, LANE)           # per-sample lane segment width
    # Batch blocking: NB samples per grid step -> GEMM lane dim NB*LM (>=256
    # lanes when possible); grid over chunks stays "parallel" for megacore.
    NB = max(1, min(N, max(1, 512 // LM)))
    G = -(-N // NB)
    N_pad = G * NB
    OFFPAD = _round_up(WO + 2, LANE)     # tail pad so shifted slices stay in bounds
    LMT = NB * LM                        # lanes of real output per grid step
    LT = LMT + OFFPAD                    # input block lane width

    # ---- stride-2 space-to-depth ("pixel unshuffle"), single cheap pass ----
    HP2, WP2 = 2 * (HO + 1), 2 * (WO + 1)
    xp = jnp.pad(x_nchw, ((0, 0), (0, 0),
                          (PH, HP2 - H - PH), (PW, WP2 - W - PW)))
    # y[n, (ph*2+pw)*CIN+ci, i*(WO+1)+j] = xp[n, ci, 2i+ph, 2j+pw]
    y = xp.reshape(N, CIN, HO + 1, 2, WO + 1, 2)
    y = jnp.transpose(y, (0, 3, 5, 1, 2, 4))          # (N, ph, pw, CIN, i, j)
    y = y.reshape(N, PHASES * CIN, flat)
    y = jnp.pad(y, ((0, N_pad - N), (0, 0), (0, LM - flat)))
    y = y.reshape(G, NB, PHASES * CIN, LM)
    y = jnp.transpose(y, (0, 2, 1, 3)).reshape(G, PHASES * CIN, LMT)
    y = jnp.pad(y, ((0, 0), (0, 0), (0, OFFPAD))).astype(jnp.float32)

    # ---- weights in shift-group K order, bias folded in as column K --------
    # Patch-row order (CIN-major inner): group(0,0): (0,0)(0,1)(1,0)(1,1);
    # group(1,0): (2,0)(2,1); group(0,1): (0,2)(1,2); group(1,1): (2,2).
    w_khwc = jnp.transpose(weight_oihw, (0, 2, 3, 1))   # (COUT, KH, KW, CIN)
    k_order = [(0, 0), (0, 1), (1, 0), (1, 1),
               (2, 0), (2, 1), (0, 2), (1, 2), (2, 2)]
    w_mat = jnp.concatenate([w_khwc[:, kh, kw, :] for kh, kw in k_order], axis=1)
    w_mat = jnp.concatenate([w_mat, bias.reshape(COUT, 1)], axis=1)   # bias col
    w_mat = jnp.pad(w_mat, ((0, COUT_PAD - COUT), (0, K_PAD - (K + 1))))
    w_mat = w_mat.astype(jnp.float32)

    off10 = WO + 1     # shift group (kh//2, kw//2) = (1, 0)
    off11 = WO + 2     # shift group (1, 1)

    # ---- fused kernel: 5-slab in-VMEM im2col + one GEMM (bias folded) ------
    def kernel(y_ref, w_ref, o_ref, patch_ref):
        yt = y_ref[0]                                   # (PHASES*CIN, LT) f32
        # group (0,0), lane offset 0: all 4 phases -> aligned 8-row slab
        patch_ref[0:8, :] = yt[0:8, 0:LMT]
        # group (1,0), offset WO+1: phases 0,1 -> 4-row slab
        patch_ref[8:12, :] = yt[0:4, off10:off10 + LMT]
        # group (0,1), offset 1: phases 0 and 2 -> two 2-row slabs
        patch_ref[12:14, :] = yt[0:2, 1:1 + LMT]
        patch_ref[14:16, :] = yt[4:6, 1:1 + LMT]
        # group (1,1), offset WO+2: phase 0 -> 2-row slab
        patch_ref[16:18, :] = yt[0:2, off11:off11 + LMT]
        # bias row = 1.0; remaining pad rows must be zeroed (scratch is uninit)
        patch_ref[K_BIAS:K_BIAS + 1, :] = jnp.ones((1, LMT), jnp.float32)
        patch_ref[K_BIAS + 1:K_PAD, :] = jnp.zeros((K_PAD - K_BIAS - 1, LMT),
                                                   jnp.float32)
        acc = jnp.dot(w_ref[...], patch_ref[...],
                      preferred_element_type=jnp.float32)   # (COUT_PAD, LMT)
        for b in range(NB):                                 # aligned 128-lane stores
            o_ref[b] = acc[:, b * LM:(b + 1) * LM]

    out_pad = pl.pallas_call(
        kernel,
        out_shape=jax.ShapeDtypeStruct((N_pad, COUT_PAD, LM), jnp.float32),
        grid=(G,),
        in_specs=[
            pl.BlockSpec((1, PHASES * CIN, LT), lambda g: (g, 0, 0)),
            pl.BlockSpec((COUT_PAD, K_PAD), lambda g: (0, 0)),
        ],
        out_specs=pl.BlockSpec((NB, COUT_PAD, LM), lambda g: (g, 0, 0)),
        scratch_shapes=[pltpu.VMEM((K_PAD, LMT), jnp.float32)],
        compiler_params=pltpu.CompilerParams(
            dimension_semantics=("parallel",)),
    )(y, w_mat)

    # ---- drop channel/lane padding and the phantom column; already NCHW ----
    out = out_pad[:N, :COUT, :HO * (WO + 1)]
    out = out.reshape(N, COUT, HO, WO + 1)[..., :WO]        # (N, COUT, HO, WO)
    return out


if __name__ == "__main__":
    key = jax.random.PRNGKey(0)
    k_x, k_w, k_b = jax.random.split(key, 3)

    # Small shapes consistent with the module: batch=2, in_channels=2, spatial=16
    x = jax.random.normal(k_x, (2, CIN, 16, 16), dtype=jnp.float32)

    # Deterministic synthetic parameters
    # TODO(synk): real weights come from conv2d_test1.pnnx.bin; synthesized here.
    weight = jax.random.normal(k_w, (COUT, CIN, KH, KW), dtype=jnp.float32) * 0.1
    bias = jax.random.normal(k_b, (COUT,), dtype=jnp.float32) * 0.1

    yout = jax.block_until_ready(conv2d_pallas(x, weight, bias))

    # Reference: XLA's native conv (same semantics as torch Conv2d), f32.
    y_ref = jax.lax.conv_general_dilated(
        x, weight,
        window_strides=(SH, SW),
        padding=((PH, PH), (PW, PW)),
        dimension_numbers=("NCHW", "OIHW", "NCHW"),
    ) + bias.reshape(1, COUT, 1, 1)

    assert yout.shape == (2, COUT, 8, 8), yout.shape
    assert jnp.allclose(yout, y_ref, atol=2e-2, rtol=2e-2), (
        float(jnp.max(jnp.abs(yout - y_ref))))

    print("KERNEL_OK")
</pallas_src>

<mosaic_0001>
module attributes {stable_mosaic.version = 11 : i64} {
  func.func @kernel(%arg0: i32, %arg1: memref<1x8x384xf32, #tpu.memory_space<vmem>>, %arg2: memref<8x24xf32, #tpu.memory_space<vmem>>, %arg3: memref<2x8x128xf32, #tpu.memory_space<vmem>>, %arg4: memref<24x256xf32, #tpu.memory_space<vmem>>) attributes {dimension_semantics = [#tpu.dimension_semantics<parallel>], iteration_bounds = array<i64: 1>, scalar_prefetch = 0 : i64, scratch_operands = 1 : i64, tpu.core_type = #tpu.core_type<tc>, window_params = [{transform_indices = @transform_0, window_bounds = array<i64: 1, 8, 384>}, {pipeline_mode = #tpu.pipeline_mode<synchronous>, transform_indices = @transform_1, window_bounds = array<i64: 8, 24>}, {transform_indices = @transform_2, window_bounds = array<i64: 2, 8, 128>}]} {
    %c0 = arith.constant 0 : index
    %c0_0 = arith.constant 0 : index
    %c0_1 = arith.constant 0 : index
    %0 = vector.load %arg1[%c0, %c0_0, %c0_1] : memref<1x8x384xf32, #tpu.memory_space<vmem>>, vector<1x8x384xf32>
    %1 = vector.shape_cast %0 : vector<1x8x384xf32> to vector<8x384xf32>
    %2 = vector.extract_strided_slice %1 {offsets = [0, 0], sizes = [8, 256], strides = [1, 1]} : vector<8x384xf32> to vector<8x256xf32>
    %c0_2 = arith.constant 0 : index
    %c0_3 = arith.constant 0 : index
    %3 = vector.load %arg4[%c0_2, %c0_3] : memref<24x256xf32, #tpu.memory_space<vmem>>, vector<8x256xf32>
    tpu.vector_store %arg4[%c0_2, %c0_3], %2 {strides = array<i32>} : memref<24x256xf32, #tpu.memory_space<vmem>>, vector<8x256xf32>,
    %4 = vector.extract_strided_slice %1 {offsets = [0, 9], sizes = [4, 256], strides = [1, 1]} : vector<8x384xf32> to vector<4x256xf32>
    %c8 = arith.constant 8 : index
    %c0_4 = arith.constant 0 : index
    %5 = vector.load %arg4[%c8, %c0_4] : memref<24x256xf32, #tpu.memory_space<vmem>>, vector<4x256xf32>
    tpu.vector_store %arg4[%c8, %c0_4], %4 {strides = array<i32>} : memref<24x256xf32, #tpu.memory_space<vmem>>, vector<4x256xf32>,
    %6 = vector.extract_strided_slice %1 {offsets = [0, 1], sizes = [2, 256], strides = [1, 1]} : vector<8x384xf32> to vector<2x256xf32>
    %c12 = arith.constant 12 : index
    %c0_5 = arith.constant 0 : index
    %7 = vector.load %arg4[%c12, %c0_5] : memref<24x256xf32, #tpu.memory_space<vmem>>, vector<2x256xf32>
    tpu.vector_store %arg4[%c12, %c0_5], %6 {strides = array<i32>} : memref<24x256xf32, #tpu.memory_space<vmem>>, vector<2x256xf32>,
    %8 = vector.extract_strided_slice %1 {offsets = [4, 1], sizes = [2, 256], strides = [1, 1]} : vector<8x384xf32> to vector<2x256xf32>
    %c14 = arith.constant 14 : index
    %c0_6 = arith.constant 0 : index
    %9 = vector.load %arg4[%c14, %c0_6] : memref<24x256xf32, #tpu.memory_space<vmem>>, vector<2x256xf32>
    tpu.vector_store %arg4[%c14, %c0_6], %8 {strides = array<i32>} : memref<24x256xf32, #tpu.memory_space<vmem>>, vector<2x256xf32>,
    %10 = vector.extract_strided_slice %1 {offsets = [0, 10], sizes = [2, 256], strides = [1, 1]} : vector<8x384xf32> to vector<2x256xf32>
    %c16 = arith.constant 16 : index
    %c0_7 = arith.constant 0 : index
    %11 = vector.load %arg4[%c16, %c0_7] : memref<24x256xf32, #tpu.memory_space<vmem>>, vector<2x256xf32>
    tpu.vector_store %arg4[%c16, %c0_7], %10 {strides = array<i32>} : memref<24x256xf32, #tpu.memory_space<vmem>>, vector<2x256xf32>,
    %cst = arith.constant 1.000000e+00 : f32
    %12 = vector.broadcast %cst : f32 to vector<1x256xf32>
    %c18 = arith.constant 18 : index
    %c0_8 = arith.constant 0 : index
    %13 = vector.load %arg4[%c18, %c0_8] : memref<24x256xf32, #tpu.memory_space<vmem>>, vector<1x256xf32>
    tpu.vector_store %arg4[%c18, %c0_8], %12 {strides = array<i32>} : memref<24x256xf32, #tpu.memory_space<vmem>>, vector<1x256xf32>,
    %cst_9 = arith.constant 0.000000e+00 : f32
    %14 = vector.broadcast %cst_9 : f32 to vector<5x256xf32>
    %c19 = arith.constant 19 : index
    %c0_10 = arith.constant 0 : index
    %15 = vector.load %arg4[%c19, %c0_10] : memref<24x256xf32, #tpu.memory_space<vmem>>, vector<5x256xf32>
    tpu.vector_store %arg4[%c19, %c0_10], %14 {strides = array<i32>} : memref<24x256xf32, #tpu.memory_space<vmem>>, vector<5x256xf32>,
    %c0_11 = arith.constant 0 : index
    %c0_12 = arith.constant 0 : index
    %16 = vector.load %arg2[%c0_11, %c0_12] : memref<8x24xf32, #tpu.memory_space<vmem>>, vector<8x24xf32>
    %c0_13 = arith.constant 0 : index
    %c0_14 = arith.constant 0 : index
    %17 = vector.load %arg4[%c0_13, %c0_14] : memref<24x256xf32, #tpu.memory_space<vmem>>, vector<24x256xf32>
    %cst_15 = arith.constant dense<0.000000e+00> : vector<8x256xf32>
    %18 = tpu.matmul %16, %17, %cst_15 {dimension_numbers = #tpu.dot_dimension_numbers<[1], [0], [0], [1], [0, 0, 1, 1], [], []>} : vector<8x24xf32>, vector<24x256xf32>, vector<8x256xf32> -> vector<8x256xf32>
    %19 = vector.extract_strided_slice %18 {offsets = [0, 0], sizes = [8, 128], strides = [1, 1]} : vector<8x256xf32> to vector<8x128xf32>
    %c0_16 = arith.constant 0 : index
    %c0_17 = arith.constant 0 : index
    %c0_18 = arith.constant 0 : index
    %20 = vector.load %arg3[%c0_16, %c0_17, %c0_18] : memref<2x8x128xf32, #tpu.memory_space<vmem>>, vector<1x8x128xf32>
    %21 = vector.shape_cast %20 : vector<1x8x128xf32> to vector<8x128xf32>
    %22 = vector.shape_cast %19 : vector<8x128xf32> to vector<1x8x128xf32>
    tpu.vector_store %arg3[%c0_16, %c0_17, %c0_18], %22 {strides = array<i32>} : memref<2x8x128xf32, #tpu.memory_space<vmem>>, vector<1x8x128xf32>,
    %23 = vector.extract_strided_slice %18 {offsets = [0, 128], sizes = [8, 128], strides = [1, 1]} : vector<8x256xf32> to vector<8x128xf32>
    %c1 = arith.constant 1 : index
    %c0_19 = arith.constant 0 : index
    %c0_20 = arith.constant 0 : index
    %24 = vector.load %arg3[%c1, %c0_19, %c0_20] : memref<2x8x128xf32, #tpu.memory_space<vmem>>, vector<1x8x128xf32>
    %25 = vector.shape_cast %24 : vector<1x8x128xf32> to vector<8x128xf32>
    %26 = vector.shape_cast %23 : vector<8x128xf32> to vector<1x8x128xf32>
    tpu.vector_store %arg3[%c1, %c0_19, %c0_20], %26 {strides = array<i32>} : memref<2x8x128xf32, #tpu.memory_space<vmem>>, vector<1x8x128xf32>,
    return
  }
  func.func @transform_0(%arg0: i32) -> (i32, i32, i32) {
    %c0_i32 = arith.constant 0 : i32
    %c0_i32_0 = arith.constant 0 : i32
    %c0_i32_1 = arith.constant 0 : i32
    return %arg0, %c0_i32, %c0_i32_0 : i32, i32, i32
  }
  func.func @transform_1(%arg0: i32) -> (i32, i32) {
    %c0_i32 = arith.constant 0 : i32
    %c0_i32_0 = arith.constant 0 : i32
    %c0_i32_1 = arith.constant 0 : i32
    return %c0_i32, %c0_i32_0 : i32, i32
  }
  func.func @transform_2(%arg0: i32) -> (i32, i32, i32) {
    %c0_i32 = arith.constant 0 : i32
    %c0_i32_0 = arith.constant 0 : i32
    %c0_i32_1 = arith.constant 0 : i32
    return %arg0, %c0_i32, %c0_i32_0 : i32, i32, i32
  }
}

</mosaic_0001>

<llo_original>
// kernel: conv2d_pallas.1
$region0: #{conv2d_pallas.1}
  #allocation0 [shape = 'u32[]', space=smem, size = 0x4, offset = 0x4, fixed_abs, tag = 'smem constant byte address 0x4 - core index']
  #allocation1 [shape = 'u32[72,128]{1,0:T(1,128)}', space=vmem, size = 0x9000, scoped, tag = 'internal scratch']
  #allocation2 [shape = 'f32[24,256]{1,0:T(8,128)}', space=vmem, size = 0x6000, scoped, tag = 'scratch operand']
  %s0 = inlined_call_operand.vmem [shape: f32[1,8,384], index: 0, kind: input, shape index: {}]
  %s1 = inlined_call_operand.vmem [shape: f32[8,24], index: 1, kind: input, shape index: {}]
  %s2 = inlined_call_operand.vmem [shape: f32[2,8,128], index: 2, kind: output, shape index: {}]
  %s3 = sld [smem:[#allocation0]]
  $region18: #{conv2d_pallas.1} parent=0
    _
  %s5 = ssub.s32 1, %s3
  %s6 = scalar_select 0, %s5, %s3
  // Predicated region
  $region2: #{conv2d_pallas.1} parent=0 // pred_check
    _
  $region3: #{conv2d_pallas.1} parent=0 // pred_check_branch
    %8 = sbr.rel (0) target = $region5
  $region4: #{conv2d_pallas.1} parent=0 // pred_region
    _
  $region5: #{conv2d_pallas.1} parent=0 // pred_fallthru
    _
  // Predicated region
  $region6: #{conv2d_pallas.1} parent=0 // pred_check
    _
  $region7: #{conv2d_pallas.1} parent=0 // pred_check_branch
    %10 = sbr.rel (0) target = $region9
  $region8: #{conv2d_pallas.1} parent=0 // pred_region
    _
  $region9: #{conv2d_pallas.1} parent=0 // pred_fallthru
    _
  %v11 = vld [vmem:[%s0] sm:$0xff]
  %v12 = vld [vmem:[%s0 + $0x8] sm:$0xff]
  %v13 = vld [vmem:[%s0 + $0x10] sm:$0xff]
  %14 = vst [vmem:[#allocation2] sm:$0xff] %v11
  %15 = vst [vmem:[#allocation2 + $0x8] sm:$0xff] %v12
  %19 = vrot.lane.b32.xlu0 %v11, 119
  %v20 = vpop.permute.xlu0 %19
  %21 = vrot.lane.b32.xlu0 %v12, 119
  %v22 = vpop.permute.xlu0 %21
  %23 = vrot.lane.b32.xlu0 %v13, 119
  %v24 = vpop.permute.xlu0 %23
  %vm25 = vcmask 973824
  %v26 = vsel %vm25, %v20, %v22
  %v27 = vsel %vm25, %v22, %v24
  %30 = vst [vmem:[#allocation2 + $0x10] sm:$0xf] %v26
  %31 = vst [vmem:[#allocation2 + $0x18] sm:$0xf] %v27
  %v32 = vrot.slane %v11, 4
  %v33 = vrot.slane %v12, 4
  %v34 = vrot.slane %v13, 4
  %35 = vrot.lane.b32.xlu0 %v32, 127
  %v36 = vpop.permute.xlu0 %35
  %37 = vrot.lane.b32.xlu0 %v33, 127
  %v38 = vpop.permute.xlu0 %37
  %39 = vrot.lane.b32.xlu0 %v34, 127
  %v40 = vpop.permute.xlu0 %39
  %vm41 = vcmask 1039360
  %v42 = vsel %vm41, %v36, %v38
  %v43 = vsel %vm41, %v38, %v40
  %46 = vst [vmem:[#allocation2 + $0x10] sm:$0x30] %v42
  %47 = vst [vmem:[#allocation2 + $0x18] sm:$0x30] %v43
  %v48 = vrot.slane %v11, 6
  %v49 = vrot.slane %v12, 6
  %v50 = vrot.slane %v13, 6
  %51 = vrot.lane.b32.xlu0 %v48, 127
  %v52 = vpop.permute.xlu0 %51
  %53 = vrot.lane.b32.xlu0 %v49, 127
  %v54 = vpop.permute.xlu0 %53
  %55 = vrot.lane.b32.xlu0 %v50, 127
  %v56 = vpop.permute.xlu0 %55
  %v57 = vsel %vm41, %v52, %v54
  %v58 = vsel %vm41, %v54, %v56
  %61 = vst [vmem:[#allocation2 + $0x10] sm:$0xc0] %v57
  %62 = vst [vmem:[#allocation2 + $0x18] sm:$0xc0] %v58
  %63 = vrot.lane.b32.xlu0 %v11, 118
  %v64 = vpop.permute.xlu0 %63
  %65 = vrot.lane.b32.xlu0 %v12, 118
  %v66 = vpop.permute.xlu0 %65
  %67 = vrot.lane.b32.xlu0 %v13, 118
  %v68 = vpop.permute.xlu0 %67
  %vm69 = vcmask 965632
  %v70 = vsel %vm69, %v64, %v66
  %v71 = vsel %vm69, %v66, %v68
  %74 = vst [vmem:[#allocation2 + $0x20] sm:$0x3] %v70
  %75 = vst [vmem:[#allocation2 + $0x28] sm:$0x3] %v71
  %v76 = vlaneseq
  %vm77 = vcmp.ge.s32.totalorder %v76, 0
  %vm78 = vcmp.lt.s32.totalorder %v76, 256
  %vm79 = vmand %vm77, %vm78
  %s80 = scalar_lea.vmem [#allocation2], 34
  %81 = vst.msk [vmem:[%s80] ss:$8 sm:$0x3] %vm79, 1.0
  %82 = vst.msk [vmem:[%s80] ss:$8 sm:$0x0] %vm79, 1.0
  %83 = vst [vmem:[#allocation2 + $0x20] sm:$0xf8] 0.0
  %84 = vst [vmem:[#allocation2 + $0x28] sm:$0xf8] 0.0
  %v85 = vld [vmem:[%s1] sm:$0xff]
  %v86 = vld [vmem:[#allocation2] sm:$0xff]
  %v87 = vld [vmem:[#allocation2 + $0x8] sm:$0xff]
  %v88 = vld [vmem:[#allocation2 + $0x10] sm:$0xff]
  %v89 = vld [vmem:[#allocation2 + $0x18] sm:$0xff]
  %v90 = vld [vmem:[#allocation2 + $0x20] sm:$0xff]
  %v91 = vld [vmem:[#allocation2 + $0x28] sm:$0xff]
  %vm92 = vcmask 195584
  %v94 = vsel %vm92, %v85, 0
  %96 = vmatpush.msra.mxu0 0.0
  %97 = vmatpush.msra.mxu0 0.0
  %98 = vmatpush.msra.mxu0 0.0
  %99 = vmatpush.msra.mxu0 0.0
  %100 = vmatpush.msra.mxu0 0.0
  %101 = vmatpush.msra.mxu0 0.0
  %102 = vmatpush.msra.mxu0 0.0
  %103 = vmatpush.msra.mxu0 0.0
  %104 = vmatpush.msra.mxu0 0.0
  %105 = vmatpush.msra.mxu0 0.0
  %106 = vmatpush.msra.mxu0 0.0
  %107 = vmatpush.msra.mxu0 0.0
  %108 = vmatpush.msra.mxu0 0.0
  %109 = vmatpush.msra.mxu0 %v90
  %110 = vmatpush.msra.mxu0 %v88
  %111 = vmatpush.msra.mxu0 %v86
  %112 = vmatmul.f32.gmra.mxu0 %v94
  %v113 = vpop.f32.mrf.mxu0
  %v114 = vadd.f32 0.0, %v113
  %115 = vdwg.mxu0
  %116 = vmatpush.msra.mxu0 0.0
  %117 = vmatpush.msra.mxu0 0.0
  %118 = vmatpush.msra.mxu0 0.0
  %119 = vmatpush.msra.mxu0 0.0
  %120 = vmatpush.msra.mxu0 0.0
  %121 = vmatpush.msra.mxu0 0.0
  %122 = vmatpush.msra.mxu0 0.0
  %123 = vmatpush.msra.mxu0 0.0
  %124 = vmatpush.msra.mxu0 0.0
  %125 = vmatpush.msra.mxu0 0.0
  %126 = vmatpush.msra.mxu0 0.0
  %127 = vmatpush.msra.mxu0 0.0
  %128 = vmatpush.msra.mxu0 0.0
  %129 = vmatpush.msra.mxu0 %v91
  %130 = vmatpush.msra.mxu0 %v89
  %131 = vmatpush.msra.mxu0 %v87
  %132 = vmatmul.f32.gmra.mxu0 %v94
  %v133 = vpop.f32.mrf.mxu0
  %v134 = vadd.f32 0.0, %v133
  %135 = vdwg.mxu0
  %136 = vst [vmem:[%s2] sm:$0xff] %v114
  %s137 = scalar_lea.vmem %s2, 8
  %138 = vst [vmem:[%s137] sm:$0xff] %v134
  // Predicated region
  $region10: #{conv2d_pallas.1} parent=0 // pred_check
    _
  $region11: #{conv2d_pallas.1} parent=0 // pred_check_branch
    %140 = sbr.rel (0) target = $region13
  $region12: #{conv2d_pallas.1} parent=0 // pred_region
    _
  $region13: #{conv2d_pallas.1} parent=0 // pred_fallthru
    _
  // Predicated region
  $region14: #{conv2d_pallas.1} parent=0 // pred_check
    _
  $region15: #{conv2d_pallas.1} parent=0 // pred_check_branch
    %142 = sbr.rel (0) target = $region17
  $region16: #{conv2d_pallas.1} parent=0 // pred_region
    _
  $region17: #{conv2d_pallas.1} parent=0 // pred_fallthru
    _

</llo_original>
